<compile_context>
chip_gen: v7x
topology: tpu7x:2x2x1
jax: 0.10.0
libtpu: 0.0.40
codegen_flags: <defaults>
</compile_context>

<pallas_src>
import functools
import math

import jax
import jax.numpy as jnp
import numpy as np
from jax import lax
from jax.experimental import pallas as pl
from jax.experimental.pallas import tpu as pltpu


# ----------------------------------------------------------------------------
# Host-side (compile-time) constants: window, folded basis, framed 1/den.
# ----------------------------------------------------------------------------
def _round_up(x, m):
    return ((x + m - 1) // m) * m


def _lcm(a, b):
    return a * b // math.gcd(a, b)


def _make_window(frame_length, window, norm):
    L = frame_length
    n = np.arange(L, dtype=np.float64)
    if window == "blackman":
        if L == 1:
            w = np.ones((1,), np.float64)
        else:
            a = 2.0 * math.pi * n / (L - 1)
            w = 0.42 - 0.5 * np.cos(a) + 0.08 * np.cos(2.0 * a)
    elif window == "hamming":
        w = 0.54 - 0.46 * np.cos(2.0 * math.pi * n / (L - 1))
    elif window == "hanning":
        w = 0.5 - 0.5 * np.cos(2.0 * math.pi * n / (L - 1))
    elif window == "bartlett":
        w = 1.0 - np.abs(2.0 * n / (L - 1) - 1.0)
    elif window == "rectangular":
        w = np.ones((L,), np.float64)
    else:
        # TODO(synk): 'trapezoidal' window type not implemented.
        raise ValueError(f"unsupported window: {window}")

    if norm == "power":
        w = w / np.sqrt(np.sum(w * w))
    elif norm == "magnitude":
        w = w / np.sum(w)
    elif norm != "none":
        raise ValueError(f"unsupported norm: {norm}")
    return w  # float64


def _make_fused_basis(fft_length, frame_length, w, k_pad, dtype):
    """Window-folded irfft basis (k_pad, L).

    irfft(Y, n=N)[t] = (1/N)[Re Y0 + (-1)^t Re Y_{N/2}
                             + 2 sum_{k=1}^{N/2-1} (Re Yk cos - Im Yk sin)]
    Rows: cos rows for k=0..N/2 (K rows), then sin rows for the interior bins
    only (Im of DC / Nyquist is ignored by irfft, so those rows are exactly
    zero and are dropped) -> exactly N rows, padded with zero rows to k_pad.
    The analysis window w[t] is folded into the columns.
    """
    N = fft_length
    K = N // 2 + 1
    t = np.arange(frame_length, dtype=np.float64)[None, :]

    k_re = np.arange(K, dtype=np.float64)[:, None]
    c = np.where((k_re == 0) | (2 * k_re == N), 1.0, 2.0)
    cr = c * np.cos(2.0 * np.pi * k_re * t / N) / N              # (K, L)

    if N % 2 == 0:
        k_im = np.arange(1, K - 1, dtype=np.float64)[:, None]    # interior bins
    else:
        k_im = np.arange(1, K, dtype=np.float64)[:, None]
    ci = -2.0 * np.sin(2.0 * np.pi * k_im * t / N) / N           # (n_im, L)

    wf = w[None, :]
    basis = np.concatenate([cr * wf, ci * wf], axis=0)           # (N, L)
    basis = np.pad(basis, ((0, k_pad - basis.shape[0]), (0, 0)))
    return jnp.asarray(basis.astype(dtype))


def _make_framed_inv_den(frame_length, frame_period, n_frames, n_frames_pad, w):
    """Framed 1/den: invf[n, l] = 1 / sum_m w[t - m*P] at t = n*P + l."""
    L, P = frame_length, frame_period
    T_real = (n_frames - 1) * P + L
    den = np.zeros((T_real,), np.float64)
    for n in range(n_frames):
        den[n * P:n * P + L] += w
    inv = np.where(den > 1e-10, 1.0 / np.maximum(den, 1e-10), 0.0)
    T_full = (n_frames_pad - 1) * P + L
    inv_full = np.zeros((T_full,), np.float64)
    inv_full[:T_real] = inv
    invf = np.zeros((n_frames_pad, L), np.float64)
    for n in range(n_frames_pad):
        invf[n] = inv_full[n * P:n * P + L]
    return jnp.asarray(invf.astype(np.float32)), T_real


# ----------------------------------------------------------------------------
# Kernel
# ----------------------------------------------------------------------------
def _istft_kernel(frame_period, bt, Fc, nb, hint128,
                  y_ref, c_ref, invf_ref, o_ref, fr_ref):
    # y_ref:    (Fc*bt, Kp)  packed [Re | Im] spectra, rows = (frame, batch)
    # c_ref:    (Kp, L)      window-folded irfft basis
    # invf_ref: (Fc, L)      framed 1/den for this chunk's frames
    # o_ref:    (bt, T_pad)  resident output accumulator for this batch tile
    # fr_ref:   (Fc*bt, L)   VMEM scratch holding the chunk's windowed frames
    L = invf_ref.shape[1]
    chunk = pl.program_id(1)

    @pl.when(chunk == 0)
    def _():
        o_ref[...] = jnp.zeros_like(o_ref)

    # irfft truncation + windowing fused into one MXU matmul (f32 accumulate).
    fr_ref[...] = jnp.dot(y_ref[...], c_ref[...],
                          preferred_element_type=jnp.float32)

    base = chunk * (Fc * frame_period)
    frames_per_band = Fc // nb

    # Banded overlap-add: frames within a band are nb apart, so their time
    # ranges are disjoint (nb*P >= L) -> no loop-carried RAW through o_ref and
    # the unrolled iterations interleave their loads/stores.
    for band in range(nb):
        def body(i, carry, band=band):
            f = band + i * nb                     # frame index inside chunk
            s = base + f * frame_period
            if hint128:
                s = pl.multiple_of(s, 128)
            r = pl.multiple_of(f * bt, bt)
            slab = fr_ref[pl.ds(r, bt), :] * invf_ref[pl.ds(f, 1), :]
            o_ref[:, pl.ds(s, L)] = o_ref[:, pl.ds(s, L)] + slab
            return carry

        lax.fori_loop(0, frames_per_band, body, 0,
                      unroll=min(4, frames_per_band))


# ----------------------------------------------------------------------------
# Wrapper
# ----------------------------------------------------------------------------
def inverse_stft(y, *, frame_length, frame_period, fft_length, center=True,
                 norm="power", window="blackman", out_length=None,
                 batch_tile=8, frames_per_chunk=None,
                 compute_dtype=jnp.bfloat16):
    """JAX/Pallas equivalent of diffsptk.InverseShortTermFourierTransform.

    y: complex array of shape (..., T/P, fft_length//2 + 1)
    returns: float32 waveform of shape (..., T)
    """
    assert 1 <= frame_length <= fft_length and frame_period >= 1
    L, P, N = frame_length, frame_period, fft_length
    K = N // 2 + 1
    lead = y.shape[:-2]
    Nf = y.shape[-2]
    assert y.shape[-1] == K
    B = int(np.prod(lead)) if lead else 1
    cd = jnp.dtype(compute_dtype)

    # Batch tile: always a multiple of 8 sublanes (dense OLA stores); pad batch.
    bt = max(8, _round_up(int(batch_tile), 8))
    G = -(-B // bt)
    B_pad = G * bt

    # Frame chunking (grid axis 1, "arbitrary"; output block stays resident).
    nb = -(-L // P)                         # frames overlapping one sample
    target = 32 if frames_per_chunk is None else int(frames_per_chunk)
    if Nf <= target:
        Fc = _round_up(Nf, nb)
        n_chunks = 1
    else:
        step = _lcm(nb, 8)                  # keeps the (Fc, L) 1/den block tileable
        Fc = max(step, _round_up(target, step))
        n_chunks = -(-Nf // Fc)
    Nf_pad = Fc * n_chunks

    # Packed real spectra: [Re Y_0..N/2 | Im Y_1..N/2-1] -> exactly N values.
    n_im = K - 2 if N % 2 == 0 else K - 1
    K2 = K + n_im                           # == N
    Kp = _round_up(K2, 128)
    yr = jnp.real(y).reshape(B, Nf, K).astype(cd)
    yi = jnp.imag(y).reshape(B, Nf, K)[..., 1:1 + n_im].astype(cd)
    yf = jnp.concatenate([yr, yi], axis=-1)                       # (B, Nf, N)
    yf = jnp.pad(yf, ((0, B_pad - B), (0, Nf_pad - Nf), (0, Kp - K2)))
    # Rows within a batch tile ordered (frame, batch): each frame is a
    # contiguous, sublane-dense slab for the OLA reads.
    yf = (yf.reshape(G, bt, Nf_pad, Kp)
            .transpose(0, 2, 1, 3)
            .reshape(G * Nf_pad * bt, Kp))

    # Compile-time constants.
    w = _make_window(L, window, norm)
    basis = _make_fused_basis(N, L, w, Kp, cd)
    invf, T_real = _make_framed_inv_den(L, P, Nf, Nf_pad, w)
    T_pad = _round_up((Nf_pad - 1) * P + L, 128)   # lane-dense output block

    hint128 = (P % 128 == 0)

    # Explicit VMEM budget from the block sizes (double-buffered inputs/output).
    vmem_bytes = (2 * Fc * bt * Kp * cd.itemsize     # spectra chunk
                  + 2 * Kp * L * cd.itemsize         # basis
                  + 2 * Fc * L * 4                   # framed 1/den
                  + 2 * bt * T_pad * 4               # resident output block
                  + Fc * bt * L * 4)                 # frame scratch
    vmem_limit = int(min(max(vmem_bytes * 5 // 4 + (2 << 20), 32 << 20),
                         100 << 20))
    # TODO(synk): very long signals (bt*T_pad*4 beyond the VMEM budget, esp. on
    # v7x's 64 MiB) would additionally need a time-axis tiling with an
    # (L - P)-sample carry/halo; not implemented here.

    kernel = functools.partial(_istft_kernel, P, bt, Fc, nb, hint128)
    out = pl.pallas_call(
        kernel,
        out_shape=jax.ShapeDtypeStruct((B_pad, T_pad), jnp.float32),
        grid_spec=pltpu.PrefetchScalarGridSpec(
            num_scalar_prefetch=0,
            grid=(G, n_chunks),
            in_specs=[
                pl.BlockSpec((Fc * bt, Kp),
                             lambda g, c: (g * n_chunks + c, 0)),  # spectra
                pl.BlockSpec((Kp, L), lambda g, c: (0, 0)),        # basis
                pl.BlockSpec((Fc, L), lambda g, c: (c, 0)),        # framed 1/den
            ],
            out_specs=pl.BlockSpec((bt, T_pad), lambda g, c: (g, 0)),
            scratch_shapes=[pltpu.VMEM((Fc * bt, L), jnp.float32)],
        ),
        compiler_params=pltpu.CompilerParams(
            dimension_semantics=("parallel", "arbitrary"),
            vmem_limit_bytes=vmem_limit),
    )(yf, basis, invf)

    x = out[:B, :T_real]                    # drop batch / time padding
    start = L // 2 if center else 0
    x = x[:, start:]
    if out_length is not None:
        x = x[:, :out_length]
    return x.reshape(lead + (x.shape[-1],))


# ----------------------------------------------------------------------------
# NumPy reference (irfft + window + overlap-add), mirrors the torch module.
# ----------------------------------------------------------------------------
def istft_reference_np(y, *, frame_length, frame_period, fft_length, center=True,
                       norm="power", window="blackman", out_length=None):
    y = np.asarray(y)
    frames = np.fft.irfft(y, n=fft_length, axis=-1)[..., :frame_length]
    w = _make_window(frame_length, window, norm)
    frames = frames * w
    Nf = frames.shape[-2]
    T = (Nf - 1) * frame_period + frame_length
    num = np.zeros(frames.shape[:-2] + (T,), np.float64)
    den = np.zeros((T,), np.float64)
    for n in range(Nf):
        sl = slice(n * frame_period, n * frame_period + frame_length)
        num[..., sl] += frames[..., n, :]
        den[sl] += w
    # Clamp like the kernel does (the compared region has den > 0 anyway).
    x = np.where(den > 1e-10, num / np.maximum(den, 1e-10), 0.0)
    start = frame_length // 2 if center else 0
    x = x[..., start:]
    if out_length is not None:
        x = x[..., :out_length]
    return x


if __name__ == "__main__":
    frame_length = 256
    frame_period = 128
    fft_length = 256
    B, Nf = 2, 6
    K = fft_length // 2 + 1

    key = jax.random.PRNGKey(0)
    kr, ki = jax.random.split(key)
    yr = jax.random.normal(kr, (B, Nf, K), jnp.float32)
    yi = jax.random.normal(ki, (B, Nf, K), jnp.float32)
    # Spectra of real signals have real DC / Nyquist bins (irfft ignores them).
    yi = yi.at[..., 0].set(0.0).at[..., -1].set(0.0)
    y = yr + 1j * yi                      # complex spectrum (B, T/P, N/2+1)

    out_length = (Nf - 1) * frame_period  # region fully covered by frames

    params = dict(frame_length=frame_length, frame_period=frame_period,
                  fft_length=fft_length, center=True, norm="power",
                  window="blackman", out_length=out_length)

    x_ref = istft_reference_np(np.asarray(y), **params)

    # f32 spectra/basis: tight tolerance.
    x32 = jax.block_until_ready(inverse_stft(y, compute_dtype=jnp.float32,
                                             **params))
    np.testing.assert_allclose(np.asarray(x32), x_ref, rtol=1e-3, atol=1e-4)

    # Default bf16 spectra/basis (f32 MXU accumulation): bf16-level tolerance.
    xbf = jax.block_until_ready(inverse_stft(y, **params))
    np.testing.assert_allclose(np.asarray(xbf), x_ref, rtol=5e-2, atol=5e-3)

    print("KERNEL_OK")
</pallas_src>

<mosaic_0001>
module attributes {stable_mosaic.version = 11 : i64} {
  func.func @_istft_kernel(%arg0: i32, %arg1: i32, %arg2: memref<48x256xf32, #tpu.memory_space<vmem>>, %arg3: memref<256x256xf32, #tpu.memory_space<vmem>>, %arg4: memref<6x256xf32, #tpu.memory_space<vmem>>, %arg5: memref<8x896xf32, #tpu.memory_space<vmem>>, %arg6: memref<48x256xf32, #tpu.memory_space<vmem>>) attributes {dimension_semantics = [#tpu.dimension_semantics<parallel>, #tpu.dimension_semantics<arbitrary>], iteration_bounds = array<i64: 1, 1>, scalar_prefetch = 0 : i64, scratch_operands = 1 : i64, tpu.core_type = #tpu.core_type<tc>, window_params = [{transform_indices = @transform_0, window_bounds = array<i64: 48, 256>}, {pipeline_mode = #tpu.pipeline_mode<synchronous>, transform_indices = @transform_1, window_bounds = array<i64: 256, 256>}, {transform_indices = @transform_2, window_bounds = array<i64: 6, 256>}, {transform_indices = @transform_3, window_bounds = array<i64: 8, 896>}]} {
    %c0_i32 = arith.constant 0 : i32
    %0 = arith.cmpi eq, %arg1, %c0_i32 : i32
    %1 = arith.extui %0 : i1 to i32
    %c0_i32_0 = arith.constant 0 : i32
    %2 = arith.cmpi ne, %1, %c0_i32_0 : i32
    scf.if %2 {
      %cst_57 = arith.constant 0.000000e+00 : f32
      %116 = vector.broadcast %cst_57 : f32 to vector<8x896xf32>
      %c0_58 = arith.constant 0 : index
      %c0_59 = arith.constant 0 : index
      %117 = vector.load %arg5[%c0_58, %c0_59] : memref<8x896xf32, #tpu.memory_space<vmem>>, vector<8x896xf32>
      tpu.vector_store %arg5[%c0_58, %c0_59], %116 {strides = array<i32>} : memref<8x896xf32, #tpu.memory_space<vmem>>, vector<8x896xf32>,
    } else {
    }
    %c0 = arith.constant 0 : index
    %c0_1 = arith.constant 0 : index
    %3 = vector.load %arg2[%c0, %c0_1] : memref<48x256xf32, #tpu.memory_space<vmem>>, vector<48x256xf32>
    %c0_2 = arith.constant 0 : index
    %c0_3 = arith.constant 0 : index
    %4 = vector.load %arg3[%c0_2, %c0_3] : memref<256x256xf32, #tpu.memory_space<vmem>>, vector<256x256xf32>
    %cst = arith.constant dense<0.000000e+00> : vector<48x256xf32>
    %5 = tpu.matmul %3, %4, %cst {dimension_numbers = #tpu.dot_dimension_numbers<[1], [0], [0], [1], [0, 0, 1, 1], [], []>} : vector<48x256xf32>, vector<256x256xf32>, vector<48x256xf32> -> vector<48x256xf32>
    %c0_4 = arith.constant 0 : index
    %c0_5 = arith.constant 0 : index
    %6 = vector.load %arg6[%c0_4, %c0_5] : memref<48x256xf32, #tpu.memory_space<vmem>>, vector<48x256xf32>
    tpu.vector_store %arg6[%c0_4, %c0_5], %5 {strides = array<i32>} : memref<48x256xf32, #tpu.memory_space<vmem>>, vector<48x256xf32>,
    %c768_i32 = arith.constant 768 : i32
    %7 = arith.muli %arg1, %c768_i32 : i32
    %c0_i32_6 = arith.constant 0 : i32
    %c2_i32 = arith.constant 2 : i32
    %8 = arith.muli %c0_i32_6, %c2_i32 : i32
    %c0_i32_7 = arith.constant 0 : i32
    %9 = arith.addi %c0_i32_7, %8 : i32
    %c128_i32 = arith.constant 128 : i32
    %10 = arith.muli %9, %c128_i32 : i32
    %11 = arith.addi %7, %10 : i32
    %12 = tpu.assume_multiple %11, 128 : i32
    %c8_i32 = arith.constant 8 : i32
    %13 = arith.muli %9, %c8_i32 : i32
    %14 = tpu.assume_multiple %13, 8 : i32
    %15 = arith.index_cast %14 : i32 to index
    %c0_8 = arith.constant 0 : index
    %16 = vector.load %arg6[%15, %c0_8] : memref<48x256xf32, #tpu.memory_space<vmem>>, vector<8x256xf32>
    %17 = arith.index_cast %9 : i32 to index
    %c0_9 = arith.constant 0 : index
    %18 = vector.load %arg4[%17, %c0_9] : memref<6x256xf32, #tpu.memory_space<vmem>>, vector<1x256xf32>
    %19 = vector.broadcast %18 : vector<1x256xf32> to vector<8x256xf32>
    %20 = arith.mulf %16, %19 : vector<8x256xf32>
    %c0_10 = arith.constant 0 : index
    %21 = arith.index_cast %12 : i32 to index
    %22 = vector.load %arg5[%c0_10, %21] : memref<8x896xf32, #tpu.memory_space<vmem>>, vector<8x256xf32>
    %23 = arith.addf %22, %20 : vector<8x256xf32>
    %c0_11 = arith.constant 0 : index
    %24 = arith.index_cast %12 : i32 to index
    %25 = vector.load %arg5[%c0_11, %24] : memref<8x896xf32, #tpu.memory_space<vmem>>, vector<8x256xf32>
    tpu.vector_store %arg5[%c0_11, %24], %23 {strides = array<i32>} : memref<8x896xf32, #tpu.memory_space<vmem>>, vector<8x256xf32>,
    %c1_i32 = arith.constant 1 : i32
    %c2_i32_12 = arith.constant 2 : i32
    %26 = arith.muli %c1_i32, %c2_i32_12 : i32
    %c0_i32_13 = arith.constant 0 : i32
    %27 = arith.addi %c0_i32_13, %26 : i32
    %c128_i32_14 = arith.constant 128 : i32
    %28 = arith.muli %27, %c128_i32_14 : i32
    %29 = arith.addi %7, %28 : i32
    %30 = tpu.assume_multiple %29, 128 : i32
    %c8_i32_15 = arith.constant 8 : i32
    %31 = arith.muli %27, %c8_i32_15 : i32
    %32 = tpu.assume_multiple %31, 8 : i32
    %33 = arith.index_cast %32 : i32 to index
    %c0_16 = arith.constant 0 : index
    %34 = vector.load %arg6[%33, %c0_16] : memref<48x256xf32, #tpu.memory_space<vmem>>, vector<8x256xf32>
    %35 = arith.index_cast %27 : i32 to index
    %c0_17 = arith.constant 0 : index
    %36 = vector.load %arg4[%35, %c0_17] : memref<6x256xf32, #tpu.memory_space<vmem>>, vector<1x256xf32>
    %37 = vector.broadcast %36 : vector<1x256xf32> to vector<8x256xf32>
    %38 = arith.mulf %34, %37 : vector<8x256xf32>
    %c0_18 = arith.constant 0 : index
    %39 = arith.index_cast %30 : i32 to index
    %40 = vector.load %arg5[%c0_18, %39] : memref<8x896xf32, #tpu.memory_space<vmem>>, vector<8x256xf32>
    %41 = arith.addf %40, %38 : vector<8x256xf32>
    %c0_19 = arith.constant 0 : index
    %42 = arith.index_cast %30 : i32 to index
    %43 = vector.load %arg5[%c0_19, %42] : memref<8x896xf32, #tpu.memory_space<vmem>>, vector<8x256xf32>
    tpu.vector_store %arg5[%c0_19, %42], %41 {strides = array<i32>} : memref<8x896xf32, #tpu.memory_space<vmem>>, vector<8x256xf32>,
    %c2_i32_20 = arith.constant 2 : i32
    %c2_i32_21 = arith.constant 2 : i32
    %44 = arith.muli %c2_i32_20, %c2_i32_21 : i32
    %c0_i32_22 = arith.constant 0 : i32
    %45 = arith.addi %c0_i32_22, %44 : i32
    %c128_i32_23 = arith.constant 128 : i32
    %46 = arith.muli %45, %c128_i32_23 : i32
    %47 = arith.addi %7, %46 : i32
    %48 = tpu.assume_multiple %47, 128 : i32
    %c8_i32_24 = arith.constant 8 : i32
    %49 = arith.muli %45, %c8_i32_24 : i32
    %50 = tpu.assume_multiple %49, 8 : i32
    %51 = arith.index_cast %50 : i32 to index
    %c0_25 = arith.constant 0 : index
    %52 = vector.load %arg6[%51, %c0_25] : memref<48x256xf32, #tpu.memory_space<vmem>>, vector<8x256xf32>
    %53 = arith.index_cast %45 : i32 to index
    %c0_26 = arith.constant 0 : index
    %54 = vector.load %arg4[%53, %c0_26] : memref<6x256xf32, #tpu.memory_space<vmem>>, vector<1x256xf32>
    %55 = vector.broadcast %54 : vector<1x256xf32> to vector<8x256xf32>
    %56 = arith.mulf %52, %55 : vector<8x256xf32>
    %c0_27 = arith.constant 0 : index
    %57 = arith.index_cast %48 : i32 to index
    %58 = vector.load %arg5[%c0_27, %57] : memref<8x896xf32, #tpu.memory_space<vmem>>, vector<8x256xf32>
    %59 = arith.addf %58, %56 : vector<8x256xf32>
    %c0_28 = arith.constant 0 : index
    %60 = arith.index_cast %48 : i32 to index
    %61 = vector.load %arg5[%c0_28, %60] : memref<8x896xf32, #tpu.memory_space<vmem>>, vector<8x256xf32>
    tpu.vector_store %arg5[%c0_28, %60], %59 {strides = array<i32>} : memref<8x896xf32, #tpu.memory_space<vmem>>, vector<8x256xf32>,
    %c3_i32 = arith.constant 3 : i32
    %c0_i32_29 = arith.constant 0 : i32
    %c2_i32_30 = arith.constant 2 : i32
    %62 = arith.muli %c0_i32_29, %c2_i32_30 : i32
    %c1_i32_31 = arith.constant 1 : i32
    %63 = arith.addi %c1_i32_31, %62 : i32
    %c128_i32_32 = arith.constant 128 : i32
    %64 = arith.muli %63, %c128_i32_32 : i32
    %65 = arith.addi %7, %64 : i32
    %66 = tpu.assume_multiple %65, 128 : i32
    %c8_i32_33 = arith.constant 8 : i32
    %67 = arith.muli %63, %c8_i32_33 : i32
    %68 = tpu.assume_multiple %67, 8 : i32
    %69 = arith.index_cast %68 : i32 to index
    %c0_34 = arith.constant 0 : index
    %70 = vector.load %arg6[%69, %c0_34] : memref<48x256xf32, #tpu.memory_space<vmem>>, vector<8x256xf32>
    %71 = arith.index_cast %63 : i32 to index
    %c0_35 = arith.constant 0 : index
    %72 = vector.load %arg4[%71, %c0_35] : memref<6x256xf32, #tpu.memory_space<vmem>>, vector<1x256xf32>
    %73 = vector.broadcast %72 : vector<1x256xf32> to vector<8x256xf32>
    %74 = arith.mulf %70, %73 : vector<8x256xf32>
    %c0_36 = arith.constant 0 : index
    %75 = arith.index_cast %66 : i32 to index
    %76 = vector.load %arg5[%c0_36, %75] : memref<8x896xf32, #tpu.memory_space<vmem>>, vector<8x256xf32>
    %77 = arith.addf %76, %74 : vector<8x256xf32>
    %c0_37 = arith.constant 0 : index
    %78 = arith.index_cast %66 : i32 to index
    %79 = vector.load %arg5[%c0_37, %78] : memref<8x896xf32, #tpu.memory_space<vmem>>, vector<8x256xf32>
    tpu.vector_store %arg5[%c0_37, %78], %77 {strides = array<i32>} : memref<8x896xf32, #tpu.memory_space<vmem>>, vector<8x256xf32>,
    %c1_i32_38 = arith.constant 1 : i32
    %c2_i32_39 = arith.constant 2 : i32
    %80 = arith.muli %c1_i32_38, %c2_i32_39 : i32
    %c1_i32_40 = arith.constant 1 : i32
    %81 = arith.addi %c1_i32_40, %80 : i32
    %c128_i32_41 = arith.constant 128 : i32
    %82 = arith.muli %81, %c128_i32_41 : i32
    %83 = arith.addi %7, %82 : i32
    %84 = tpu.assume_multiple %83, 128 : i32
    %c8_i32_42 = arith.constant 8 : i32
    %85 = arith.muli %81, %c8_i32_42 : i32
    %86 = tpu.assume_multiple %85, 8 : i32
    %87 = arith.index_cast %86 : i32 to index
    %c0_43 = arith.constant 0 : index
    %88 = vector.load %arg6[%87, %c0_43] : memref<48x256xf32, #tpu.memory_space<vmem>>, vector<8x256xf32>
    %89 = arith.index_cast %81 : i32 to index
    %c0_44 = arith.constant 0 : index
    %90 = vector.load %arg4[%89, %c0_44] : memref<6x256xf32, #tpu.memory_space<vmem>>, vector<1x256xf32>
    %91 = vector.broadcast %90 : vector<1x256xf32> to vector<8x256xf32>
    %92 = arith.mulf %88, %91 : vector<8x256xf32>
    %c0_45 = arith.constant 0 : index
    %93 = arith.index_cast %84 : i32 to index
    %94 = vector.load %arg5[%c0_45, %93] : memref<8x896xf32, #tpu.memory_space<vmem>>, vector<8x256xf32>
    %95 = arith.addf %94, %92 : vector<8x256xf32>
    %c0_46 = arith.constant 0 : index
    %96 = arith.index_cast %84 : i32 to index
    %97 = vector.load %arg5[%c0_46, %96] : memref<8x896xf32, #tpu.memory_space<vmem>>, vector<8x256xf32>
    tpu.vector_store %arg5[%c0_46, %96], %95 {strides = array<i32>} : memref<8x896xf32, #tpu.memory_space<vmem>>, vector<8x256xf32>,
    %c2_i32_47 = arith.constant 2 : i32
    %c2_i32_48 = arith.constant 2 : i32
    %98 = arith.muli %c2_i32_47, %c2_i32_48 : i32
    %c1_i32_49 = arith.constant 1 : i32
    %99 = arith.addi %c1_i32_49, %98 : i32
    %c128_i32_50 = arith.constant 128 : i32
    %100 = arith.muli %99, %c128_i32_50 : i32
    %101 = arith.addi %7, %100 : i32
    %102 = tpu.assume_multiple %101, 128 : i32
    %c8_i32_51 = arith.constant 8 : i32
    %103 = arith.muli %99, %c8_i32_51 : i32
    %104 = tpu.assume_multiple %103, 8 : i32
    %105 = arith.index_cast %104 : i32 to index
    %c0_52 = arith.constant 0 : index
    %106 = vector.load %arg6[%105, %c0_52] : memref<48x256xf32, #tpu.memory_space<vmem>>, vector<8x256xf32>
    %107 = arith.index_cast %99 : i32 to index
    %c0_53 = arith.constant 0 : index
    %108 = vector.load %arg4[%107, %c0_53] : memref<6x256xf32, #tpu.memory_space<vmem>>, vector<1x256xf32>
    %109 = vector.broadcast %108 : vector<1x256xf32> to vector<8x256xf32>
    %110 = arith.mulf %106, %109 : vector<8x256xf32>
    %c0_54 = arith.constant 0 : index
    %111 = arith.index_cast %102 : i32 to index
    %112 = vector.load %arg5[%c0_54, %111] : memref<8x896xf32, #tpu.memory_space<vmem>>, vector<8x256xf32>
    %113 = arith.addf %112, %110 : vector<8x256xf32>
    %c0_55 = arith.constant 0 : index
    %114 = arith.index_cast %102 : i32 to index
    %115 = vector.load %arg5[%c0_55, %114] : memref<8x896xf32, #tpu.memory_space<vmem>>, vector<8x256xf32>
    tpu.vector_store %arg5[%c0_55, %114], %113 {strides = array<i32>} : memref<8x896xf32, #tpu.memory_space<vmem>>, vector<8x256xf32>,
    %c3_i32_56 = arith.constant 3 : i32
    return
  }
  func.func @transform_0(%arg0: i32, %arg1: i32) -> (i32, i32) {
    %c1_i32 = arith.constant 1 : i32
    %0 = arith.muli %arg0, %c1_i32 : i32
    %1 = arith.addi %0, %arg1 : i32
    %c0_i32 = arith.constant 0 : i32
    %c0_i32_0 = arith.constant 0 : i32
    return %1, %c0_i32 : i32, i32
  }
  func.func @transform_1(%arg0: i32, %arg1: i32) -> (i32, i32) {
    %c0_i32 = arith.constant 0 : i32
    %c0_i32_0 = arith.constant 0 : i32
    %c0_i32_1 = arith.constant 0 : i32
    return %c0_i32, %c0_i32_0 : i32, i32
  }
  func.func @transform_2(%arg0: i32, %arg1: i32) -> (i32, i32) {
    %c0_i32 = arith.constant 0 : i32
    %c0_i32_0 = arith.constant 0 : i32
    return %arg1, %c0_i32 : i32, i32
  }
  func.func @transform_3(%arg0: i32, %arg1: i32) -> (i32, i32) {
    %c0_i32 = arith.constant 0 : i32
    %c0_i32_0 = arith.constant 0 : i32
    return %arg0, %c0_i32 : i32, i32
  }
}

</mosaic_0001>

<llo_original>
// kernel: tpu_custom_call.1
$region0: #{tpu_custom_call.1}
  #allocation0 [shape = 'u32[]', space=smem, size = 0x4, offset = 0x4, fixed_abs, tag = 'smem constant byte address 0x4 - core index']
  #allocation1 [shape = 'u32[144,128]{1,0:T(1,128)}', space=vmem, size = 0x12000, scoped, tag = 'internal scratch']
  #allocation2 [shape = 'f32[48,256]{1,0:T(8,128)}', space=vmem, size = 0xc000, scoped, tag = 'scratch operand']
  %s0 = inlined_call_operand.hbm [shape: f32[48,256], index: 0, kind: input, shape index: {}]
  %s1 = inlined_call_operand.hbm [shape: f32[256,256], index: 1, kind: input, shape index: {}]
  %s2 = inlined_call_operand.hbm [shape: f32[6,256], index: 2, kind: input, shape index: {}]
  %s3 = inlined_call_operand.hbm [shape: f32[8,896], index: 3, kind: output, shape index: {}]
  %s4 = sld [smem:[#allocation0]]
  $region38: #{tpu_custom_call.1} parent=0
    _
  %s6 = ssub.s32 1, %s4
  %s7 = scalar_select 0, %s6, %s4
  $region1: #{tpu_custom_call.1} parent=0
    #allocation3 [shape = 'u8[49152]{0}', space=vmem, size = 0xc000, scoped, tag = 'input window, operand 0, single buffered']
    #allocation4 [shape = 's32[1]{0}', space=sflag, size = 0x4, scoped, tag = 'scoped memory for tpu_custom_call.1']
    #allocation5 [shape = 's32[1]{0}', space=sflag, size = 0x4, scoped, tag = 'scoped memory for tpu_custom_call.1']
    #allocation6 [shape = 'u8[262144]{0}', space=vmem, size = 0x40000, scoped, tag = 'input window, operand 1, single buffered']
    #allocation7 [shape = 's32[1]{0}', space=sflag, size = 0x4, scoped, tag = 'scoped memory for tpu_custom_call.1']
    #allocation8 [shape = 'u8[8192]{0}', space=vmem, size = 0x2000, scoped, tag = 'input window, operand 2, single buffered']
    #allocation9 [shape = 'u8[28672]{0}', space=vmem, size = 0x7000, scoped, tag = 'output window, operand 0, single buffered']
    %8 = vsyncpa [#allocation4], 0
    %9 = vsyncpa [#allocation7], 0
    %10 = vsyncpa [#allocation5], 0
    // Predicated region
    $region2: #{tpu_custom_call.1} parent=1 // pred_check
      _
    $region3: #{tpu_custom_call.1} parent=1 // pred_check_branch
      %12 = sbr.rel (0) target = $region5
    $region4: #{tpu_custom_call.1} parent=1 // pred_region
      %s13 = sadd.s32 0, 0
      %s14 = smul.u32 6, %s13
      %s16 = ssub.s32 1536, 1536
      %17 = vsyncadd [#allocation4], %s16
      %s18 = smul.addr %s14, 2
      %s19 = smul.addr %s18, 128
      %s20 = scalar_lea.hbm %s0, %s19
      %s21 = sshll.u32 [#allocation3], 4
      %s22 = int_to_ptr.vmem [resolvable:$true] %s21
      %27 = dma.hbm_to_vmem [thread:$0]  %s20, 1536, %s22, [#allocation4], 256, 256, 16
    $region5: #{tpu_custom_call.1} parent=1 // pred_fallthru
      _
    // Predicated region
    $region6: #{tpu_custom_call.1} parent=1 // pred_check
      _
    $region7: #{tpu_custom_call.1} parent=1 // pred_check_branch
      %29 = sbr.rel (0) target = $region9
    $region8: #{tpu_custom_call.1} parent=1 // pred_region
      %s31 = ssub.s32 8192, 8192
      %32 = vsyncadd [#allocation7], %s31
      %s33 = sshll.u32 [#allocation6], 4
      %s34 = int_to_ptr.vmem [resolvable:$true] %s33
      %39 = dma.hbm_to_vmem [thread:$0]  %s1, 8192, %s34, [#allocation7], 256, 256, 16
    $region9: #{tpu_custom_call.1} parent=1 // pred_fallthru
      _
    // Predicated region
    $region10: #{tpu_custom_call.1} parent=1 // pred_check
      _
    $region11: #{tpu_custom_call.1} parent=1 // pred_check_branch
      %41 = sbr.rel (0) target = $region13
    $region12: #{tpu_custom_call.1} parent=1 // pred_region
      %s43 = ssub.s32 256, 256
      %44 = vsyncadd [#allocation7], %s43
      %s46 = sshll.u32 [#allocation8], 4
      %s47 = int_to_ptr.vmem [resolvable:$true] %s46
      %49 = dma.hbm_to_vmem [thread:$0]  %s2, 256, %s47, [#allocation7]
    $region13: #{tpu_custom_call.1} parent=1 // pred_fallthru
      _
    // Predicated region
    $region14: #{tpu_custom_call.1} parent=1 // pred_check
      _
    $region15: #{tpu_custom_call.1} parent=1 // pred_check_branch
      %51 = sbr.rel (0) target = $region17
    $region16: #{tpu_custom_call.1} parent=1 // pred_region
      %52 = dma.done [#allocation4], 1536
    $region17: #{tpu_custom_call.1} parent=1 // pred_fallthru
      _
    // Predicated region
    $region18: #{tpu_custom_call.1} parent=1 // pred_check
      _
    $region19: #{tpu_custom_call.1} parent=1 // pred_check_branch
      %54 = sbr.rel (0) target = $region21
    $region20: #{tpu_custom_call.1} parent=1 // pred_region
      %55 = dma.done [#allocation7], 8192
    $region21: #{tpu_custom_call.1} parent=1 // pred_fallthru
      _
    // Predicated region
    $region22: #{tpu_custom_call.1} parent=1 // pred_check
      _
    $region23: #{tpu_custom_call.1} parent=1 // pred_check_branch
      %57 = sbr.rel (0) target = $region25
    $region24: #{tpu_custom_call.1} parent=1 // pred_region
      %58 = dma.done [#allocation7], 256
    $region25: #{tpu_custom_call.1} parent=1 // pred_fallthru
      _
    %s59 = sadd.s32 0, 0
    %s60 = smul.u32 6, %s59
    %p61 = scmp.eq.s32.totalorder 0, 0
    // Predicated region
    $region26: #{tpu_custom_call.1} parent=1 // pred_check
      %p62 = pneg %p61
    $region27: #{tpu_custom_call.1} parent=1 // pred_check_branch
      %64 = sbr.rel (%p62) target = $region29
    $region28: #{tpu_custom_call.1} parent=1 // pred_region
      %65 = vst [vmem:[#allocation9] sm:$0xff] 0.0
      %66 = vst [vmem:[#allocation9 + $0x8] sm:$0xff] 0.0
      %67 = vst [vmem:[#allocation9 + $0x10] sm:$0xff] 0.0
      %68 = vst [vmem:[#allocation9 + $0x18] sm:$0xff] 0.0
      %69 = vst [vmem:[#allocation9 + $0x20] sm:$0xff] 0.0
      %70 = vst [vmem:[#allocation9 + $0x28] sm:$0xff] 0.0
      %71 = vst [vmem:[#allocation9 + $0x30] sm:$0xff] 0.0
    $region29: #{tpu_custom_call.1} parent=1 // pred_fallthru
      _
    %v72 = vld [vmem:[#allocation3] sm:$0xff]
    %v73 = vld [vmem:[#allocation3 + $0x8] sm:$0xff]
    %v74 = vld [vmem:[#allocation3 + $0x10] sm:$0xff]
    %v75 = vld [vmem:[#allocation3 + $0x18] sm:$0xff]
    %v76 = vld [vmem:[#allocation3 + $0x20] sm:$0xff]
    %v77 = vld [vmem:[#allocation3 + $0x28] sm:$0xff]
    %v78 = vld [vmem:[#allocation3 + $0x30] sm:$0xff]
    %v79 = vld [vmem:[#allocation3 + $0x38] sm:$0xff]
    %v80 = vld [vmem:[#allocation3 + $0x40] sm:$0xff]
    %v81 = vld [vmem:[#allocation3 + $0x48] sm:$0xff]
    %v82 = vld [vmem:[#allocation3 + $0x50] sm:$0xff]
    %v83 = vld [vmem:[#allocation3 + $0x58] sm:$0xff]
    %v84 = vld [vmem:[#allocation6] sm:$0xff]
    %v85 = vld [vmem:[#allocation6 + $0x8] sm:$0xff]
    %v86 = vld [vmem:[#allocation6 + $0x10] sm:$0xff]
    %v87 = vld [vmem:[#allocation6 + $0x18] sm:$0xff]
    %v88 = vld [vmem:[#allocation6 + $0x20] sm:$0xff]
    %v89 = vld [vmem:[#allocation6 + $0x28] sm:$0xff]
    %v90 = vld [vmem:[#allocation6 + $0x30] sm:$0xff]
    %v91 = vld [vmem:[#allocation6 + $0x38] sm:$0xff]
    %v92 = vld [vmem:[#allocation6 + $0x40] sm:$0xff]
    %v93 = vld [vmem:[#allocation6 + $0x48] sm:$0xff]
    %v94 = vld [vmem:[#allocation6 + $0x50] sm:$0xff]
    %v95 = vld [vmem:[#allocation6 + $0x58] sm:$0xff]
    %v96 = vld [vmem:[#allocation6 + $0x60] sm:$0xff]
    %v97 = vld [vmem:[#allocation6 + $0x68] sm:$0xff]
    %v98 = vld [vmem:[#allocation6 + $0x70] sm:$0xff]
    %v99 = vld [vmem:[#allocation6 + $0x78] sm:$0xff]
    %v100 = vld [vmem:[#allocation6 + $0x80] sm:$0xff]
    %v101 = vld [vmem:[#allocation6 + $0x88] sm:$0xff]
    %v102 = vld [vmem:[#allocation6 + $0x90] sm:$0xff]
    %v103 = vld [vmem:[#allocation6 + $0x98] sm:$0xff]
    %v104 = vld [vmem:[#allocation6 + $0xa0] sm:$0xff]
    %v105 = vld [vmem:[#allocation6 + $0xa8] sm:$0xff]
    %v106 = vld [vmem:[#allocation6 + $0xb0] sm:$0xff]
    %v107 = vld [vmem:[#allocation6 + $0xb8] sm:$0xff]
    %v108 = vld [vmem:[#allocation6 + $0xc0] sm:$0xff]
    %v109 = vld [vmem:[#allocation6 + $0xc8] sm:$0xff]
    %v110 = vld [vmem:[#allocation6 + $0xd0] sm:$0xff]
    %v111 = vld [vmem:[#allocation6 + $0xd8] sm:$0xff]
    %v112 = vld [vmem:[#allocation6 + $0xe0] sm:$0xff]
    %v113 = vld [vmem:[#allocation6 + $0xe8] sm:$0xff]
    %v114 = vld [vmem:[#allocation6 + $0xf0] sm:$0xff]
    %v115 = vld [vmem:[#allocation6 + $0xf8] sm:$0xff]
    %v116 = vld [vmem:[#allocation6 + $0x100] sm:$0xff]
    %v117 = vld [vmem:[#allocation6 + $0x108] sm:$0xff]
    %v118 = vld [vmem:[#allocation6 + $0x110] sm:$0xff]
    %v119 = vld [vmem:[#allocation6 + $0x118] sm:$0xff]
    %v120 = vld [vmem:[#allocation6 + $0x120] sm:$0xff]
    %v121 = vld [vmem:[#allocation6 + $0x128] sm:$0xff]
    %v122 = vld [vmem:[#allocation6 + $0x130] sm:$0xff]
    %v123 = vld [vmem:[#allocation6 + $0x138] sm:$0xff]
    %v124 = vld [vmem:[#allocation6 + $0x140] sm:$0xff]
    %v125 = vld [vmem:[#allocation6 + $0x148] sm:$0xff]
    %v126 = vld [vmem:[#allocation6 + $0x150] sm:$0xff]
    %v127 = vld [vmem:[#allocation6 + $0x158] sm:$0xff]
    %v128 = vld [vmem:[#allocation6 + $0x160] sm:$0xff]
    %v129 = vld [vmem:[#allocation6 + $0x168] sm:$0xff]
    %v130 = vld [vmem:[#allocation6 + $0x170] sm:$0xff]
    %v131 = vld [vmem:[#allocation6 + $0x178] sm:$0xff]
    %v132 = vld [vmem:[#allocation6 + $0x180] sm:$0xff]
    %v133 = vld [vmem:[#allocation6 + $0x188] sm:$0xff]
    %v134 = vld [vmem:[#allocation6 + $0x190] sm:$0xff]
    %v135 = vld [vmem:[#allocation6 + $0x198] sm:$0xff]
    %v136 = vld [vmem:[#allocation6 + $0x1a0] sm:$0xff]
    %v137 = vld [vmem:[#allocation6 + $0x1a8] sm:$0xff]
    %v138 = vld [vmem:[#allocation6 + $0x1b0] sm:$0xff]
    %v139 = vld [vmem:[#allocation6 + $0x1b8] sm:$0xff]
    %v140 = vld [vmem:[#allocation6 + $0x1c0] sm:$0xff]
    %v141 = vld [vmem:[#allocation6 + $0x1c8] sm:$0xff]
    %v142 = vld [vmem:[#allocation6 + $0x1d0] sm:$0xff]
    %v143 = vld [vmem:[#allocation6 + $0x1d8] sm:$0xff]
    %v144 = vld [vmem:[#allocation6 + $0x1e0] sm:$0xff]
    %v145 = vld [vmem:[#allocation6 + $0x1e8] sm:$0xff]
    %v146 = vld [vmem:[#allocation6 + $0x1f0] sm:$0xff]
    %v147 = vld [vmem:[#allocation6 + $0x1f8] sm:$0xff]
    %148 = vmatprep.subr.mxu0 %v85
    %149 = vmatpush1.msra.mxu0 %v84
    %150 = vmatprep.subr.mxu0 %v87
    %151 = vmatpush1.msra.mxu0 %v86
    %152 = vmatprep.subr.mxu0 %v89
    %153 = vmatpush1.msra.mxu0 %v88
    %154 = vmatprep.subr.mxu0 %v91
    %155 = vmatpush1.msra.mxu0 %v90
    %156 = vmatprep.subr.mxu0 %v93
    %157 = vmatpush1.msra.mxu0 %v92
    %158 = vmatprep.subr.mxu0 %v95
    %159 = vmatpush1.msra.mxu0 %v94
    %160 = vmatprep.subr.mxu0 %v97
    %161 = vmatpush1.msra.mxu0 %v96
    %162 = vmatprep.subr.mxu0 %v99
    %163 = vmatpush1.msra.mxu0 %v98
    %164 = vmatprep.subr.mxu0 %v101
    %165 = vmatpush1.msra.mxu0 %v100
    %166 = vmatprep.subr.mxu0 %v103
    %167 = vmatpush1.msra.mxu0 %v102
    %168 = vmatprep.subr.mxu0 %v105
    %169 = vmatpush1.msra.mxu0 %v104
    %170 = vmatprep.subr.mxu0 %v107
    %171 = vmatpush1.msra.mxu0 %v106
    %172 = vmatprep.subr.mxu0 %v109
    %173 = vmatpush1.msra.mxu0 %v108
    %174 = vmatprep.subr.mxu0 %v111
    %175 = vmatpush1.msra.mxu0 %v110
    %176 = vmatprep.subr.mxu0 %v113
    %177 = vmatpush1.msra.mxu0 %v112
    %178 = vmatprep.subr.mxu0 %v115
    %179 = vmatpush1.msra.mxu0 %v114
    %180 = vmatprep.subr.mxu0 %v117
    %181 = vmatpush1.msra.mxu0 %v116
    %182 = vmatprep.subr.mxu0 %v119
    %183 = vmatpush1.msra.mxu0 %v118
    %184 = vmatprep.subr.mxu0 %v121
    %185 = vmatpush1.msra.mxu0 %v120
    %186 = vmatprep.subr.mxu0 %v123
    %187 = vmatpush1.msra.mxu0 %v122
    %188 = vmatprep.subr.mxu0 %v125
    %189 = vmatpush1.msra.mxu0 %v124
    %190 = vmatprep.subr.mxu0 %v127
    %191 = vmatpush1.msra.mxu0 %v126
    %192 = vmatprep.subr.mxu0 %v129
    %193 = vmatpush1.msra.mxu0 %v128
    %194 = vmatprep.subr.mxu0 %v131
    %195 = vmatpush1.msra.mxu0 %v130
    %196 = vmatprep.subr.mxu0 %v133
    %197 = vmatpush1.msra.mxu0 %v132
    %198 = vmatprep.subr.mxu0 %v135
    %199 = vmatpush1.msra.mxu0 %v134
    %200 = vmatprep.subr.mxu0 %v137
    %201 = vmatpush1.msra.mxu0 %v136
    %202 = vmatprep.subr.mxu0 %v139
    %203 = vmatpush1.msra.mxu0 %v138
    %204 = vmatprep.subr.mxu0 %v141
    %205 = vmatpush1.msra.mxu0 %v140
    %206 = vmatprep.subr.mxu0 %v143
    %207 = vmatpush1.msra.mxu0 %v142
    %208 = vmatprep.subr.mxu0 %v145
    %209 = vmatpush1.msra.mxu0 %v144
    %210 = vmatprep.subr.mxu0 %v147
    %211 = vmatpush1.msra.mxu0 %v146
    %212 = vmatprep.mubr.f32.mxu0 %v73
    %213 = vmatmul.mubr.f32.gmra.mrb[0].mxu0 %v72
    %v214 = vpop.f32.mrb[0].mxu0
    %v215 = vadd.f32 0.0, %v214
    %v216 = vpop.f32.mrb[0].mxu0
    %v217 = vadd.f32 0.0, %v216
    %218 = vmatprep.mubr.f32.mxu0 %v75
    %219 = vmatmul.mubr.f32.gmra.mrb[0].mxu0 %v74
    %v220 = vpop.f32.mrb[0].mxu0
    %v221 = vadd.f32 0.0, %v220
    %v222 = vpop.f32.mrb[0].mxu0
    %v223 = vadd.f32 0.0, %v222
    %224 = vmatprep.mubr.f32.mxu0 %v77
    %225 = vmatmul.mubr.f32.gmra.mrb[0].mxu0 %v76
    %v226 = vpop.f32.mrb[0].mxu0
    %v227 = vadd.f32 0.0, %v226
    %v228 = vpop.f32.mrb[0].mxu0
    %v229 = vadd.f32 0.0, %v228
    %230 = vmatprep.mubr.f32.mxu0 %v79
    %231 = vmatmul.mubr.f32.gmra.mrb[0].mxu0 %v78
    %v232 = vpop.f32.mrb[0].mxu0
    %v233 = vadd.f32 0.0, %v232
    %v234 = vpop.f32.mrb[0].mxu0
    %v235 = vadd.f32 0.0, %v234
    %236 = vmatprep.mubr.f32.mxu0 %v81
    %237 = vmatmul.mubr.f32.gmra.mrb[0].mxu0 %v80
    %v238 = vpop.f32.mrb[0].mxu0
    %v239 = vadd.f32 0.0, %v238
    %v240 = vpop.f32.mrb[0].mxu0
    %v241 = vadd.f32 0.0, %v240
    %242 = vmatprep.mubr.f32.mxu0 %v83
    %243 = vmatmul.mubr.f32.gmra.mrb[0].mxu0 %v82
    %v244 = vpop.f32.mrb[0].mxu0
    %v245 = vadd.f32 0.0, %v244
    %v246 = vpop.f32.mrb[0].mxu0
    %v247 = vadd.f32 0.0, %v246
    %248 = vdwg.mxu0
    %249 = vst [vmem:[#allocation2] sm:$0xff] %v215
    %250 = vst [vmem:[#allocation2 + $0x8] sm:$0xff] %v217
    %251 = vst [vmem:[#allocation2 + $0x10] sm:$0xff] %v221
    %252 = vst [vmem:[#allocation2 + $0x18] sm:$0xff] %v223
    %253 = vst [vmem:[#allocation2 + $0x20] sm:$0xff] %v227
    %254 = vst [vmem:[#allocation2 + $0x28] sm:$0xff] %v229
    %255 = vst [vmem:[#allocation2 + $0x30] sm:$0xff] %v233
    %256 = vst [vmem:[#allocation2 + $0x38] sm:$0xff] %v235
    %257 = vst [vmem:[#allocation2 + $0x40] sm:$0xff] %v239
    %258 = vst [vmem:[#allocation2 + $0x48] sm:$0xff] %v241
    %259 = vst [vmem:[#allocation2 + $0x50] sm:$0xff] %v245
    %260 = vst [vmem:[#allocation2 + $0x58] sm:$0xff] %v247
    %s261 = smul.u32 0, 768
    %s262 = smul.u32 0, 2
    %s263 = smul.addr %s262, 8
    %s264 = scalar_lea.vmem [#allocation2], %s263
    %v265 = vld [vmem:[%s264] sm:$0xff]
    %v266 = vld [vmem:[%s264 + $0x8] sm:$0xff]
    %v267 = vld [vmem:[#allocation8] ss:$8 sm:$0x3]
    %v269 = vlaneseq
    %v270 = vshrl.u32 %v269, 7
    %v271 = vsub.s32 0, %v270
    %v272 = vrot.slane %v267, %v271
    %v273 = vlaneseq
    %v274 = vshrl.u32 %v273, 7
    %v275 = vsub.s32 1, %v274
    %v276 = vrot.slane %v267, %v275
    %v279 = vmul.f32 %v265, %v272
    %v280 = vmul.f32 %v266, %v276
    %s281 = sshra.s32 %s261, 7
    %s282 = sand.u32 %s261, 127
    %s283 = smul.addr %s281, 8
    %s284 = scalar_lea.vmem [#allocation9], %s283
    %v285 = vld [vmem:[%s284] sm:$0xff]
    %v286 = vld [vmem:[%s284 + $0x8] sm:$0xff]
    %v287 = vadd.f32 %v285, %v279
    %v288 = vadd.f32 %v286, %v280
    %289 = vst [vmem:[%s284] sm:$0xff] %v287
    %290 = vst [vmem:[%s284 + $0x8] sm:$0xff] %v288
    %s291 = sadd.s32 %s261, 256
    %s292 = smul.u32 2, 2
    %s293 = smul.addr %s292, 8
    %s294 = scalar_lea.vmem [#allocation2], %s293
    %v295 = vld [vmem:[%s294] sm:$0xff]
    %v296 = vld [vmem:[%s294 + $0x8] sm:$0xff]
    %s297 = scalar_lea.vmem [#allocation8], 2
    %v298 = vld [vmem:[%s297] ss:$8 sm:$0x3]
    %v300 = vlaneseq
    %v301 = vshrl.u32 %v300, 7
    %v302 = vsub.s32 0, %v301
    %v303 = vrot.slane %v298, %v302
    %v304 = vlaneseq
    %v305 = vshrl.u32 %v304, 7
    %v306 = vsub.s32 1, %v305
    %v307 = vrot.slane %v298, %v306
    %v310 = vmul.f32 %v295, %v303
    %v311 = vmul.f32 %v296, %v307
    %s312 = sshra.s32 %s291, 7
    %s313 = sand.u32 %s291, 127
    %s314 = smul.addr %s312, 8
    %s315 = scalar_lea.vmem [#allocation9], %s314
    %v316 = vld [vmem:[%s315] sm:$0xff]
    %v317 = vld [vmem:[%s315 + $0x8] sm:$0xff]
    %v318 = vadd.f32 %v316, %v310
    %v319 = vadd.f32 %v317, %v311
    %320 = vst [vmem:[%s315] sm:$0xff] %v318
    %321 = vst [vmem:[%s315 + $0x8] sm:$0xff] %v319
    %s322 = sadd.s32 %s261, 512
    %s323 = smul.u32 4, 2
    %s324 = smul.addr %s323, 8
    %s325 = scalar_lea.vmem [#allocation2], %s324
    %v326 = vld [vmem:[%s325] sm:$0xff]
    %v327 = vld [vmem:[%s325 + $0x8] sm:$0xff]
    %s328 = scalar_lea.vmem [#allocation8], 4
    %v329 = vld [vmem:[%s328] ss:$8 sm:$0x3]
    %v331 = vlaneseq
    %v332 = vshrl.u32 %v331, 7
    %v333 = vsub.s32 0, %v332
    %v334 = vrot.slane %v329, %v333
    %v335 = vlaneseq
    %v336 = vshrl.u32 %v335, 7
    %v337 = vsub.s32 1, %v336
    %v338 = vrot.slane %v329, %v337
    %v341 = vmul.f32 %v326, %v334
    %v342 = vmul.f32 %v327, %v338
    %s343 = sshra.s32 %s322, 7
    %s344 = sand.u32 %s322, 127
    %s345 = smul.addr %s343, 8
    %s346 = scalar_lea.vmem [#allocation9], %s345
    %v347 = vld [vmem:[%s346] sm:$0xff]
    %v348 = vld [vmem:[%s346 + $0x8] sm:$0xff]
    %v349 = vadd.f32 %v347, %v341
    %v350 = vadd.f32 %v348, %v342
    %351 = vst [vmem:[%s346] sm:$0xff] %v349
    %352 = vst [vmem:[%s346 + $0x8] sm:$0xff] %v350
    %s353 = sadd.s32 %s261, 128
    %s354 = smul.u32 1, 2
    %s355 = smul.addr %s354, 8
    %s356 = scalar_lea.vmem [#allocation2], %s355
    %v357 = vld [vmem:[%s356] sm:$0xff]
    %v358 = vld [vmem:[%s356 + $0x8] sm:$0xff]
    %s359 = scalar_lea.vmem [#allocation8], 1
    %v360 = vld [vmem:[%s359] ss:$8 sm:$0x3]
    %v362 = vlaneseq
    %v363 = vshrl.u32 %v362, 7
    %v364 = vsub.s32 0, %v363
    %v365 = vrot.slane %v360, %v364
    %v366 = vlaneseq
    %v367 = vshrl.u32 %v366, 7
    %v368 = vsub.s32 1, %v367
    %v369 = vrot.slane %v360, %v368
    %v372 = vmul.f32 %v357, %v365
    %v373 = vmul.f32 %v358, %v369
    %s374 = sshra.s32 %s353, 7
    %s375 = sand.u32 %s353, 127
    %s376 = smul.addr %s374, 8
    %s377 = scalar_lea.vmem [#allocation9], %s376
    %v378 = vld [vmem:[%s377] sm:$0xff]
    %v379 = vld [vmem:[%s377 + $0x8] sm:$0xff]
    %v380 = vadd.f32 %v378, %v372
    %v381 = vadd.f32 %v379, %v373
    %382 = vst [vmem:[%s377] sm:$0xff] %v380
    %383 = vst [vmem:[%s377 + $0x8] sm:$0xff] %v381
    %s384 = sadd.s32 %s261, 384
    %s385 = smul.u32 3, 2
    %s386 = smul.addr %s385, 8
    %s387 = scalar_lea.vmem [#allocation2], %s386
    %v388 = vld [vmem:[%s387] sm:$0xff]
    %v389 = vld [vmem:[%s387 + $0x8] sm:$0xff]
    %s390 = scalar_lea.vmem [#allocation8], 3
    %v391 = vld [vmem:[%s390] ss:$8 sm:$0x3]
    %v393 = vlaneseq
    %v394 = vshrl.u32 %v393, 7
    %v395 = vsub.s32 0, %v394
    %v396 = vrot.slane %v391, %v395
    %v397 = vlaneseq
    %v398 = vshrl.u32 %v397, 7
    %v399 = vsub.s32 1, %v398
    %v400 = vrot.slane %v391, %v399
    %v403 = vmul.f32 %v388, %v396
    %v404 = vmul.f32 %v389, %v400
    %s405 = sshra.s32 %s384, 7
    %s406 = sand.u32 %s384, 127
    %s407 = smul.addr %s405, 8
    %s408 = scalar_lea.vmem [#allocation9], %s407
    %v409 = vld [vmem:[%s408] sm:$0xff]
    %v410 = vld [vmem:[%s408 + $0x8] sm:$0xff]
    %v411 = vadd.f32 %v409, %v403
    %v412 = vadd.f32 %v410, %v404
    %413 = vst [vmem:[%s408] sm:$0xff] %v411
    %414 = vst [vmem:[%s408 + $0x8] sm:$0xff] %v412
    %s415 = sadd.s32 %s261, 640
    %s416 = smul.u32 5, 2
    %s417 = smul.addr %s416, 8
    %s418 = scalar_lea.vmem [#allocation2], %s417
    %v419 = vld [vmem:[%s418] sm:$0xff]
    %v420 = vld [vmem:[%s418 + $0x8] sm:$0xff]
    %s421 = scalar_lea.vmem [#allocation8], 5
    %v422 = vld [vmem:[%s421] ss:$8 sm:$0x3]
    %v424 = vlaneseq
    %v425 = vshrl.u32 %v424, 7
    %v426 = vsub.s32 0, %v425
    %v427 = vrot.slane %v422, %v426
    %v428 = vlaneseq
    %v429 = vshrl.u32 %v428, 7
    %v430 = vsub.s32 1, %v429
    %v431 = vrot.slane %v422, %v430
    %v434 = vmul.f32 %v419, %v427
    %v435 = vmul.f32 %v420, %v431
    %s436 = sshra.s32 %s415, 7
    %s437 = sand.u32 %s415, 127
    %s438 = smul.addr %s436, 8
    %s439 = scalar_lea.vmem [#allocation9], %s438
    %v440 = vld [vmem:[%s439] sm:$0xff]
    %v441 = vld [vmem:[%s439 + $0x8] sm:$0xff]
    %v442 = vadd.f32 %v440, %v434
    %v443 = vadd.f32 %v441, %v435
    %444 = vst [vmem:[%s439] sm:$0xff] %v442
    %445 = vst [vmem:[%s439 + $0x8] sm:$0xff] %v443
    // Predicated region
    $region30: #{tpu_custom_call.1} parent=1 // pred_check
      _
    $region31: #{tpu_custom_call.1} parent=1 // pred_check_branch
      %447 = sbr.rel (0) target = $region33
    $region32: #{tpu_custom_call.1} parent=1 // pred_region
      %s449 = ssub.s32 896, 896
      %450 = vsyncadd [#allocation5], %s449
      %s452 = sshll.u32 [#allocation9], 4
      %s453 = int_to_ptr.vmem [resolvable:$true] %s452
      %455 = dma.vmem_to_hbm [thread:$0]  %s453, 896, %s3, [#allocation5]
    $region33: #{tpu_custom_call.1} parent=1 // pred_fallthru
      _
    // Predicated region
    $region34: #{tpu_custom_call.1} parent=1 // pred_check
      _
    $region35: #{tpu_custom_call.1} parent=1 // pred_check_branch
      %457 = sbr.rel (0) target = $region37
    $region36: #{tpu_custom_call.1} parent=1 // pred_region
      %458 = dma.done [#allocation5], 896
    $region37: #{tpu_custom_call.1} parent=1 // pred_fallthru
      _
    %459 = vsyncpa [#allocation4], 1
    %460 = vsyncpa [#allocation7], 1
    %461 = vsyncpa [#allocation5], 1

</llo_original>
